<compile_context>
chip_gen: v7x
topology: tpu7x:2x2x1
jax: 0.10.0
libtpu: 0.0.40
codegen_flags: <defaults>
</compile_context>

<pallas_src>
import functools

import jax
import jax.numpy as jnp
from jax.experimental import pallas as pl
from jax.experimental.pallas import tpu as pltpu


def _fm_kernel(x_ref, o_ref, sum_acc, sq_acc, *, reduce_sum, group, embed):
    """Grid = (batch_tiles, feature_tiles); axis 1 (features) is the reduction."""
    s = pl.program_id(1)

    @pl.when(s == 0)
    def _init():
        sum_acc[...] = jnp.zeros_like(sum_acc)
        sq_acc[...] = jnp.zeros_like(sq_acc)

    x = x_ref[...].astype(jnp.float32)          # (TB, TS, E2), f32 accumulation
    sum_acc[...] += jnp.sum(x, axis=1)          # running sum_s x      -> (TB, E2)
    sq_acc[...] += jnp.sum(x * x, axis=1)       # running sum_s x^2    -> (TB, E2)

    @pl.when(s == pl.num_programs(1) - 1)
    def _finalize():
        sx = sum_acc[...]
        sq = sq_acc[...]
        if group > 1:
            # Fold the `group` lane-groups (each of width `embed`) back
            # together.  This must happen BEFORE squaring: the full sum over
            # all features per (batch, embed) must be complete first.
            fx = sx[:, 0:embed]
            fq = sq[:, 0:embed]
            for g in range(1, group):
                fx = fx + sx[:, g * embed:(g + 1) * embed]
                fq = fq + sq[:, g * embed:(g + 1) * embed]
            sx, sq = fx, fq
        ix = sx * sx - sq                        # (TB, E)
        if reduce_sum:
            out = 0.5 * jnp.sum(ix, axis=1, keepdims=True)   # (TB, 1)
        else:
            out = 0.5 * ix                                    # (TB, E)
        o_ref[...] = out.astype(o_ref.dtype)


def _round_up(x, m):
    return ((x + m - 1) // m) * m


def _round_down(x, m):
    return (x // m) * m


def _vmem_capacity_bytes():
    try:
        return int(pltpu.get_tpu_info().vmem_capacity_bytes)
    except Exception:
        return 64 * 1024 * 1024   # conservative (v7x-sized) fallback


def fm_forward(x, reduce_sum=True):
    """FM forward: (B, S, E) -> (B, 1) if reduce_sum else (B, E)."""
    B, S, E = x.shape
    itemsize = jnp.dtype(x.dtype).itemsize
    out_e = 1 if reduce_sum else E

    # ---- Lane folding: pack `group` feature rows into one lane-dense row. ----
    group = 1
    if E < 128:
        for g in range(min(S, max(1, 128 // E)), 0, -1):
            if S % g == 0 and g * E <= 128:
                group = g
                break
    S2, E2 = S // group, E * group
    x2 = x.reshape(B, S2, E2) if group > 1 else x   # contiguous -> free reshape

    # ---- Generation-aware VMEM budgets. ----
    vmem_cap = _vmem_capacity_bytes()               # 128 MiB v5e/v6e, 64 MiB v7x
    resid_budget = vmem_cap // 2                    # target total on-chip residency
    vmem_limit = min(int(vmem_cap * 0.75), 96 * 1024 * 1024)

    # ---- Reduction-axis tile: keep the full folded feature dim if it fits. ----
    row_bytes = S2 * E2 * itemsize                  # one batch row (all features)
    if 16 * row_bytes <= resid_budget:              # 8 batch rows, double-buffered
        TS = S2
        S2p = S2
    else:
        TS = max(8, _round_down(resid_budget // (16 * E2 * itemsize), 8))
        S2p = _round_up(S2, TS)
        if S2p != S2:
            # Zero padding is neutral for both sum(x) and sum(x^2).
            x2 = jnp.pad(x2, ((0, 0), (0, S2p - S2), (0, 0)))

    # ---- Batch tile derived from the residency budget (incl. scratch/output). --
    per_tb = 2 * TS * E2 * itemsize + 2 * E2 * 4 + 2 * out_e * itemsize
    TB = max(8, _round_down(resid_budget // per_tb, 8))
    if TB >= B:
        # Don't exceed B; keep >=2 batch blocks when possible (v7x megacore).
        TB = B if B < 16 else _round_up((B + 1) // 2, 8)

    grid = (pl.cdiv(B, TB), S2p // TS)

    kernel = functools.partial(
        _fm_kernel, reduce_sum=reduce_sum, group=group, embed=E)

    cost = pl.CostEstimate(
        flops=3 * B * S * E + 3 * B * E,
        transcendentals=0,
        bytes_accessed=B * S * E * itemsize + B * out_e * itemsize,
    )

    return pl.pallas_call(
        kernel,
        out_shape=jax.ShapeDtypeStruct((B, out_e), x.dtype),
        grid=grid,
        in_specs=[pl.BlockSpec((TB, TS, E2), lambda b, s: (b, s, 0))],
        # Same output block for every reduction step s (accumulator pattern).
        out_specs=pl.BlockSpec((TB, out_e), lambda b, s: (b, 0)),
        scratch_shapes=[
            pltpu.VMEM((TB, E2), jnp.float32),   # running sum(x)
            pltpu.VMEM((TB, E2), jnp.float32),   # running sum(x^2)
        ],
        compiler_params=pltpu.CompilerParams(
            dimension_semantics=("parallel", "arbitrary"),
            vmem_limit_bytes=vmem_limit,
        ),
        cost_estimate=cost,
    )(x2)


def _fm_reference(x, reduce_sum=True):
    square_of_sum = jnp.sum(x, axis=1) ** 2
    sum_of_square = jnp.sum(x ** 2, axis=1)
    ix = square_of_sum - sum_of_square
    if reduce_sum:
        ix = jnp.sum(ix, axis=1, keepdims=True)
    return 0.5 * ix


if __name__ == "__main__":
    key = jax.random.PRNGKey(0)

    # (B, S, E) = (batch, num_features, embed_dim)
    configs = [
        (2, 8, 32, True),    # lane-folded path (G=4 -> 128 lanes), reduce_sum
        (2, 8, 32, False),   # lane-folded path, per-embed output (B, E)
        (5, 12, 16, True),   # partial fold (G=6 -> 96 lanes), tiny odd batch
        (20, 7, 32, True),   # no fold (7 prime), partial batch tail (TB=16)
    ]
    for idx, (B, S, E, rs) in enumerate(configs):
        key, sub = jax.random.split(key)
        x = jax.random.normal(sub, (B, S, E), dtype=jnp.float32)
        out = jax.block_until_ready(fm_forward(x, reduce_sum=rs))
        ref = _fm_reference(x, reduce_sum=rs)
        assert out.shape == ref.shape, (out.shape, ref.shape)
        assert jnp.allclose(out, ref, atol=1e-4, rtol=1e-4), f"mismatch in cfg {idx}"

    print("KERNEL_OK")
</pallas_src>

<mosaic_0001>
module attributes {stable_mosaic.version = 11 : i64} {
  func.func @_fm_kernel(%arg0: i32, %arg1: i32, %arg2: memref<2x2x128xf32, #tpu.memory_space<vmem>>, %arg3: memref<2x1xf32, #tpu.memory_space<vmem>>, %arg4: memref<2x128xf32, #tpu.memory_space<vmem>>, %arg5: memref<2x128xf32, #tpu.memory_space<vmem>>) attributes {dimension_semantics = [#tpu.dimension_semantics<parallel>, #tpu.dimension_semantics<arbitrary>], iteration_bounds = array<i64: 1, 1>, scalar_prefetch = 0 : i64, scratch_operands = 2 : i64, tpu.core_type = #tpu.core_type<tc>, window_params = [{transform_indices = @transform_0, window_bounds = array<i64: 2, 2, 128>}, {transform_indices = @transform_1, window_bounds = array<i64: 2, 1>}]} {
    %c0_i32 = arith.constant 0 : i32
    %0 = arith.cmpi eq, %arg1, %c0_i32 : i32
    %1 = arith.extui %0 : i1 to i32
    %c0_i32_0 = arith.constant 0 : i32
    %2 = arith.cmpi ne, %1, %c0_i32_0 : i32
    scf.if %2 {
      %cst_14 = arith.constant 0.000000e+00 : f32
      %16 = vector.broadcast %cst_14 : f32 to vector<2x128xf32>
      %c0_15 = arith.constant 0 : index
      %c0_16 = arith.constant 0 : index
      %17 = vector.load %arg4[%c0_15, %c0_16] : memref<2x128xf32, #tpu.memory_space<vmem>>, vector<2x128xf32>
      tpu.vector_store %arg4[%c0_15, %c0_16], %16 {strides = array<i32>} : memref<2x128xf32, #tpu.memory_space<vmem>>, vector<2x128xf32>,
      %cst_17 = arith.constant 0.000000e+00 : f32
      %18 = vector.broadcast %cst_17 : f32 to vector<2x128xf32>
      %c0_18 = arith.constant 0 : index
      %c0_19 = arith.constant 0 : index
      %19 = vector.load %arg5[%c0_18, %c0_19] : memref<2x128xf32, #tpu.memory_space<vmem>>, vector<2x128xf32>
      tpu.vector_store %arg5[%c0_18, %c0_19], %18 {strides = array<i32>} : memref<2x128xf32, #tpu.memory_space<vmem>>, vector<2x128xf32>,
    } else {
    }
    %c0 = arith.constant 0 : index
    %c0_1 = arith.constant 0 : index
    %c0_2 = arith.constant 0 : index
    %3 = vector.load %arg2[%c0, %c0_1, %c0_2] : memref<2x2x128xf32, #tpu.memory_space<vmem>>, vector<2x2x128xf32>
    %c0_3 = arith.constant 0 : index
    %c0_4 = arith.constant 0 : index
    %4 = vector.load %arg4[%c0_3, %c0_4] : memref<2x128xf32, #tpu.memory_space<vmem>>, vector<2x128xf32>
    %cst = arith.constant dense<0.000000e+00> : vector<2x128xf32>
    %5 = vector.multi_reduction <add>, %3, %cst [1] : vector<2x2x128xf32> to vector<2x128xf32>
    %6 = arith.addf %4, %5 : vector<2x128xf32>
    %c0_5 = arith.constant 0 : index
    %c0_6 = arith.constant 0 : index
    %7 = vector.load %arg4[%c0_5, %c0_6] : memref<2x128xf32, #tpu.memory_space<vmem>>, vector<2x128xf32>
    tpu.vector_store %arg4[%c0_5, %c0_6], %6 {strides = array<i32>} : memref<2x128xf32, #tpu.memory_space<vmem>>, vector<2x128xf32>,
    %c0_7 = arith.constant 0 : index
    %c0_8 = arith.constant 0 : index
    %8 = vector.load %arg5[%c0_7, %c0_8] : memref<2x128xf32, #tpu.memory_space<vmem>>, vector<2x128xf32>
    %9 = arith.mulf %3, %3 : vector<2x2x128xf32>
    %cst_9 = arith.constant dense<0.000000e+00> : vector<2x128xf32>
    %10 = vector.multi_reduction <add>, %9, %cst_9 [1] : vector<2x2x128xf32> to vector<2x128xf32>
    %11 = arith.addf %8, %10 : vector<2x128xf32>
    %c0_10 = arith.constant 0 : index
    %c0_11 = arith.constant 0 : index
    %12 = vector.load %arg5[%c0_10, %c0_11] : memref<2x128xf32, #tpu.memory_space<vmem>>, vector<2x128xf32>
    tpu.vector_store %arg5[%c0_10, %c0_11], %11 {strides = array<i32>} : memref<2x128xf32, #tpu.memory_space<vmem>>, vector<2x128xf32>,
    %c0_i32_12 = arith.constant 0 : i32
    %13 = arith.cmpi eq, %arg1, %c0_i32_12 : i32
    %14 = arith.extui %13 : i1 to i32
    %c0_i32_13 = arith.constant 0 : i32
    %15 = arith.cmpi ne, %14, %c0_i32_13 : i32
    scf.if %15 {
      %c0_14 = arith.constant 0 : index
      %c0_15 = arith.constant 0 : index
      %16 = vector.load %arg4[%c0_14, %c0_15] : memref<2x128xf32, #tpu.memory_space<vmem>>, vector<2x128xf32>
      %c0_16 = arith.constant 0 : index
      %c0_17 = arith.constant 0 : index
      %17 = vector.load %arg5[%c0_16, %c0_17] : memref<2x128xf32, #tpu.memory_space<vmem>>, vector<2x128xf32>
      %18 = vector.extract_strided_slice %16 {offsets = [0, 0], sizes = [2, 32], strides = [1, 1]} : vector<2x128xf32> to vector<2x32xf32>
      %19 = vector.extract_strided_slice %17 {offsets = [0, 0], sizes = [2, 32], strides = [1, 1]} : vector<2x128xf32> to vector<2x32xf32>
      %20 = vector.extract_strided_slice %16 {offsets = [0, 32], sizes = [2, 32], strides = [1, 1]} : vector<2x128xf32> to vector<2x32xf32>
      %21 = arith.addf %18, %20 : vector<2x32xf32>
      %22 = vector.extract_strided_slice %17 {offsets = [0, 32], sizes = [2, 32], strides = [1, 1]} : vector<2x128xf32> to vector<2x32xf32>
      %23 = arith.addf %19, %22 : vector<2x32xf32>
      %24 = vector.extract_strided_slice %16 {offsets = [0, 64], sizes = [2, 32], strides = [1, 1]} : vector<2x128xf32> to vector<2x32xf32>
      %25 = arith.addf %21, %24 : vector<2x32xf32>
      %26 = vector.extract_strided_slice %17 {offsets = [0, 64], sizes = [2, 32], strides = [1, 1]} : vector<2x128xf32> to vector<2x32xf32>
      %27 = arith.addf %23, %26 : vector<2x32xf32>
      %28 = vector.extract_strided_slice %16 {offsets = [0, 96], sizes = [2, 32], strides = [1, 1]} : vector<2x128xf32> to vector<2x32xf32>
      %29 = arith.addf %25, %28 : vector<2x32xf32>
      %30 = vector.extract_strided_slice %17 {offsets = [0, 96], sizes = [2, 32], strides = [1, 1]} : vector<2x128xf32> to vector<2x32xf32>
      %31 = arith.addf %27, %30 : vector<2x32xf32>
      %32 = arith.mulf %29, %29 : vector<2x32xf32>
      %33 = arith.subf %32, %31 : vector<2x32xf32>
      %cst_18 = arith.constant dense<0.000000e+00> : vector<2xf32>
      %34 = vector.multi_reduction <add>, %33, %cst_18 [1] : vector<2x32xf32> to vector<2xf32>
      %35 = vector.shape_cast %34 : vector<2xf32> to vector<2x1xf32>
      %cst_19 = arith.constant 5.000000e-01 : f32
      %36 = vector.broadcast %cst_19 : f32 to vector<2x1xf32>
      %37 = arith.mulf %36, %35 : vector<2x1xf32>
      %c0_20 = arith.constant 0 : index
      %c0_21 = arith.constant 0 : index
      %38 = vector.load %arg3[%c0_20, %c0_21] : memref<2x1xf32, #tpu.memory_space<vmem>>, vector<2x1xf32>
      tpu.vector_store %arg3[%c0_20, %c0_21], %37 {strides = array<i32>} : memref<2x1xf32, #tpu.memory_space<vmem>>, vector<2x1xf32>,
    } else {
    }
    return
  }
  func.func @transform_0(%arg0: i32, %arg1: i32) -> (i32, i32, i32) {
    %c0_i32 = arith.constant 0 : i32
    %c0_i32_0 = arith.constant 0 : i32
    return %arg0, %arg1, %c0_i32 : i32, i32, i32
  }
  func.func @transform_1(%arg0: i32, %arg1: i32) -> (i32, i32) {
    %c0_i32 = arith.constant 0 : i32
    %c0_i32_0 = arith.constant 0 : i32
    return %arg0, %c0_i32 : i32, i32
  }
}

</mosaic_0001>

<llo_original>
// kernel: tpu_custom_call.1
$region0: #{tpu_custom_call.1}
  #allocation0 [shape = 'u32[]', space=smem, size = 0x4, offset = 0x4, fixed_abs, tag = 'smem constant byte address 0x4 - core index']
  #allocation1 [shape = 'u32[144,128]{1,0:T(1,128)}', space=vmem, size = 0x12000, scoped, tag = 'internal scratch']
  #allocation2 [shape = 'f32[2,128]{1,0:T(2,128)}', space=vmem, size = 0x400, scoped, tag = 'scratch operand']
  #allocation3 [shape = 'f32[2,128]{1,0:T(2,128)}', space=vmem, size = 0x400, scoped, tag = 'scratch operand']
  %s0 = inlined_call_operand.hbm [shape: f32[2,2,128], index: 0, kind: input, shape index: {}]
  %s1 = inlined_call_operand.vmem [shape: f32[2,1], index: 1, kind: output, shape index: {}]
  %s2 = sld [smem:[#allocation0]]
  $region26: #{tpu_custom_call.1} parent=0
    _
  %s4 = ssub.s32 1, %s2
  %s5 = scalar_select 0, %s4, %s2
  $region1: #{tpu_custom_call.1} parent=0
    #allocation4 [shape = 'u8[2048]{0}', space=vmem, size = 0x800, scoped, tag = 'input window, operand 0, single buffered']
    #allocation5 [shape = 's32[1]{0}', space=sflag, size = 0x4, scoped, tag = 'scoped memory for tpu_custom_call.1']
    %6 = vsyncpa [#allocation5], 0
    // Predicated region
    $region2: #{tpu_custom_call.1} parent=1 // pred_check
      _
    $region3: #{tpu_custom_call.1} parent=1 // pred_check_branch
      %8 = sbr.rel (0) target = $region5
    $region4: #{tpu_custom_call.1} parent=1 // pred_region
      %s10 = ssub.s32 64, 64
      %11 = vsyncadd [#allocation5], %s10
      %s12 = sshll.u32 [#allocation4], 4
      %s13 = int_to_ptr.vmem [resolvable:$true] %s12
      %18 = dma.hbm_to_vmem [thread:$0]  %s0, 64, %s13, [#allocation5], 32, 32, 2
    $region5: #{tpu_custom_call.1} parent=1 // pred_fallthru
      _
    // Predicated region
    $region6: #{tpu_custom_call.1} parent=1 // pred_check
      _
    $region7: #{tpu_custom_call.1} parent=1 // pred_check_branch
      %20 = sbr.rel (0) target = $region9
    $region8: #{tpu_custom_call.1} parent=1 // pred_region
      %21 = dma.done [#allocation5], 64
    $region9: #{tpu_custom_call.1} parent=1 // pred_fallthru
      _
    %p22 = scmp.eq.s32.totalorder 0, 0
    // Predicated region
    $region10: #{tpu_custom_call.1} parent=1 // pred_check
      %p23 = pneg %p22
    $region11: #{tpu_custom_call.1} parent=1 // pred_check_branch
      %25 = sbr.rel (%p23) target = $region13
    $region12: #{tpu_custom_call.1} parent=1 // pred_region
      %26 = vst [vmem:[#allocation2] sm:$0x3] 0.0
      %27 = vst [vmem:[#allocation3] sm:$0x3] 0.0
    $region13: #{tpu_custom_call.1} parent=1 // pred_fallthru
      _
    %v28 = vld [vmem:[#allocation4] sm:$0x3]
    %v29 = vld [vmem:[#allocation4 + $0x2] sm:$0x3]
    %v30 = vld [vmem:[#allocation2] sm:$0x3]
    %vm31 = vcmask 1041408
    %v32 = vsel %vm31, %v28, 0.0
    %v33 = vrot.slane %v32, 4
    %v34 = vadd.f32 %v32, %v33
    %v35 = vrot.slane %v34, 2
    %v36 = vadd.f32 %v34, %v35
    %v37 = vrot.slane %v36, 1
    %v38 = vadd.f32 %v36, %v37
    %v39 = vsel %vm31, %v29, 0.0
    %v40 = vrot.slane %v39, 4
    %v41 = vadd.f32 %v39, %v40
    %v42 = vrot.slane %v41, 2
    %v43 = vadd.f32 %v41, %v42
    %v44 = vrot.slane %v43, 1
    %v45 = vadd.f32 %v43, %v44
    %vm48 = vcmask 1041409
    %v49 = vsel %vm48, %v45, %v38
    %v51 = vadd.f32 %v30, %v49
    %52 = vst [vmem:[#allocation2] sm:$0x3] %v51
    %v53 = vld [vmem:[#allocation3] sm:$0x3]
    %v54 = vmul.f32 %v28, %v28
    %v55 = vmul.f32 %v29, %v29
    %v56 = vsel %vm31, %v54, 0.0
    %v57 = vrot.slane %v56, 4
    %v58 = vadd.f32 %v56, %v57
    %v59 = vrot.slane %v58, 2
    %v60 = vadd.f32 %v58, %v59
    %v61 = vrot.slane %v60, 1
    %v62 = vadd.f32 %v60, %v61
    %v63 = vsel %vm31, %v55, 0.0
    %v64 = vrot.slane %v63, 4
    %v65 = vadd.f32 %v63, %v64
    %v66 = vrot.slane %v65, 2
    %v67 = vadd.f32 %v65, %v66
    %v68 = vrot.slane %v67, 1
    %v69 = vadd.f32 %v67, %v68
    %v72 = vsel %vm48, %v69, %v62
    %v74 = vadd.f32 %v53, %v72
    %75 = vst [vmem:[#allocation3] sm:$0x3] %v74
    // Predicated region
    $region14: #{tpu_custom_call.1} parent=1 // pred_check
      %p76 = pneg %p22
    $region15: #{tpu_custom_call.1} parent=1 // pred_check_branch
      %78 = sbr.rel (%p76) target = $region17
    $region16: #{tpu_custom_call.1} parent=1 // pred_region
      %v79 = vld [vmem:[#allocation2] sm:$0x3]
      %v80 = vld [vmem:[#allocation3] sm:$0x3]
      %82 = vrot.lane.b32.xlu0 %v79, 96
      %v83 = vpop.permute.xlu0 %82
      %v85 = vadd.f32 %v79, %v83
      %87 = vrot.lane.b32.xlu0 %v80, 96
      %v88 = vpop.permute.xlu0 %87
      %v90 = vadd.f32 %v80, %v88
      %91 = vrot.lane.b32.xlu0 %v79, 64
      %v92 = vpop.permute.xlu0 %91
      %v94 = vadd.f32 %v85, %v92
      %95 = vrot.lane.b32.xlu0 %v80, 64
      %v96 = vpop.permute.xlu0 %95
      %v98 = vadd.f32 %v90, %v96
      %99 = vrot.lane.b32.xlu0 %v79, 32
      %v100 = vpop.permute.xlu0 %99
      %v102 = vadd.f32 %v94, %v100
      %103 = vrot.lane.b32.xlu0 %v80, 32
      %v104 = vpop.permute.xlu0 %103
      %v106 = vadd.f32 %v98, %v104
      %v107 = vmul.f32 %v102, %v102
      %v108 = vsub.f32 %v107, %v106
      %vm109 = vcmask 254976
      %v110 = vsel %vm109, %v108, 0.0
      %111 = vadd.xlane.f32.xlu0 %v110
      %v112 = vpop.xlane.xlu0 %111
      %v113 = vmul.f32 %v112, 0.5
      %vm114 = vcmask 1024
      %115 = vst.msk [vmem:[%s1] sm:$0x3] %vm114, %v113
    $region17: #{tpu_custom_call.1} parent=1 // pred_fallthru
      _
    // Predicated region
    $region18: #{tpu_custom_call.1} parent=1 // pred_check
      _
    $region19: #{tpu_custom_call.1} parent=1 // pred_check_branch
      %117 = sbr.rel (0) target = $region21
    $region20: #{tpu_custom_call.1} parent=1 // pred_region
      _
    $region21: #{tpu_custom_call.1} parent=1 // pred_fallthru
      _
    // Predicated region
    $region22: #{tpu_custom_call.1} parent=1 // pred_check
      _
    $region23: #{tpu_custom_call.1} parent=1 // pred_check_branch
      %119 = sbr.rel (0) target = $region25
    $region24: #{tpu_custom_call.1} parent=1 // pred_region
      _
    $region25: #{tpu_custom_call.1} parent=1 // pred_fallthru
      _
    %120 = vsyncpa [#allocation5], 1

</llo_original>
